<compile_context>
chip_gen: v7x
topology: tpu7x:2x2x1
jax: 0.10.0
libtpu: 0.0.40
codegen_flags: <defaults>
</compile_context>

<pallas_src>
import functools

import jax
import jax.numpy as jnp
import numpy as np
from jax.experimental import pallas as pl
from jax.experimental.pallas import tpu as pltpu


_LANE = 128
_SUBLANE = 8
_UNROLL_K_MAX = 16                 # direct shifted adds up to this K, MXU band above
_MAX_BLOCK_ELEMS = 512 * 1024      # f32 elems per main (rows x dt) block (~2 MiB)
_VMEM_LIMIT_BYTES = 64 * 1024 * 1024


def _round_up(x, m):
    return ((x + m - 1) // m) * m


def _pick_dt(d, rows, max_elems=_MAX_BLOCK_ELEMS):
    """Feature-tile width: lane-aligned when possible, bounded so rows*dt fits."""
    cap = max(1, max_elems // max(rows, 1))
    if d <= cap:
        return d
    if cap >= _LANE:
        return (cap // _LANE) * _LANE
    # TODO(synk): for extremely long sequences this can still exceed the budget;
    # a ragged (cdiv) sequence tiling of the general path would be needed.
    return min(d, _LANE)


def _pick_ts(s, halo, max_ts, min_ts):
    """Largest seq tile <= max_ts that divides s, is a multiple of halo, >= min_ts."""
    hi = min(s, max_ts)
    lo = max(halo, min_ts)
    for ts in range(hi, lo - 1, -1):
        if s % ts == 0 and ts % halo == 0:
            return ts
    # TODO(synk): ragged last tile (cdiv grid + masked tail) not implemented;
    # awkward S falls back to the bounded full-sequence path.
    return None


def _pool_matrix(s, kernel_size, stride, pad, s_out):
    """A[t, j] = #{k in [0,K): clamp(t*stride + k - pad, 0, s-1) == j}, as f32.

    Folds replication padding and the stride into one constant matrix so the
    kernel is a single exact MXU matmul (integer counts, scaled by 1/K after
    accumulation)."""
    a = np.zeros((s_out, s), dtype=np.float32)
    for t in range(s_out):
        base = t * stride - pad
        for k in range(kernel_size):
            j = min(max(base + k, 0), s - 1)
            a[t, j] += 1.0
    return jnp.asarray(a)


def _band_matrix(ts, kernel_size, pad):
    """Band[t, c] = 1 if t <= c < t + K over a (ts + 2*pad)-row window."""
    n = ts + 2 * pad
    r = np.arange(ts)[:, None]
    c = np.arange(n)[None, :]
    return jnp.asarray(((c >= r) & (c < r + kernel_size)).astype(np.float32))


# ---------------------------------------------------------------------------
# Kernels
# ---------------------------------------------------------------------------


def _full_direct_kernel(x_ref, o_ref, *, kernel_size, pad):
    """Whole sequence per block; stride == 1 and K <= _UNROLL_K_MAX."""
    x = x_ref[0].astype(jnp.float32)                      # (S, dt)
    s, d = x.shape
    if pad > 0:
        front = jnp.broadcast_to(x[0:1], (pad, d))
        back = jnp.broadcast_to(x[s - 1:s], (pad, d))
        xw = jnp.concatenate([front, x, back], axis=0)    # (S + 2*pad, dt)
    else:
        xw = x
    n_pos = s + 2 * pad - kernel_size + 1
    acc = xw[0:n_pos]
    for j in range(1, kernel_size):
        acc = acc + xw[j:j + n_pos]
    o_ref[...] = (acc * (1.0 / kernel_size))[jnp.newaxis].astype(o_ref.dtype)


def _full_matmul_kernel(a_ref, x_ref, o_ref, *, kernel_size):
    """Whole sequence per block; any stride / K via a constant pooling matrix.

    Replication padding, window sums and the stride are all folded into `a`
    (integer counts), so only the s_out surviving rows are computed / stored.
    """
    x = x_ref[0].astype(jnp.float32)                      # (S, dt)
    acc = jnp.dot(a_ref[...], x, preferred_element_type=jnp.float32)
    o_ref[...] = (acc * (1.0 / kernel_size))[jnp.newaxis].astype(o_ref.dtype)


def _tiled_kernel(*refs, kernel_size, pad, halo, n_seq_tiles, use_mxu):
    """Seq-tiled path (stride == 1, odd K): halo rows from neighbouring blocks."""
    if use_mxu:
        ab_ref, xm_ref, xf_ref, xb_ref, o_ref = refs
    else:
        xm_ref, xf_ref, xb_ref, o_ref = refs
    i = pl.program_id(2)
    xm = xm_ref[0].astype(jnp.float32)                    # (ts, dt)
    ts, d = xm.shape

    # Front halo: last `pad` rows of the previous tile; replicate row 0 on the
    # first tile.  (The select only touches a (pad, dt) slab — cheap.)
    xf = xf_ref[0].astype(jnp.float32)[halo - pad:halo]
    front = jnp.where(i == 0, jnp.broadcast_to(xm[0:1], (pad, d)), xf)
    # Back halo: first `pad` rows of the next tile; replicate the last row on
    # the final tile.
    xb = xb_ref[0].astype(jnp.float32)[0:pad]
    back = jnp.where(i == n_seq_tiles - 1,
                     jnp.broadcast_to(xm[ts - 1:ts], (pad, d)), xb)

    # TODO(synk): the halo concat is one extra tile-sized copy per step; it
    # could be removed with a 3-way split matmul / rolled adds.
    xw = jnp.concatenate([front, xm, back], axis=0)       # (ts + 2*pad, dt)
    if use_mxu:
        acc = jnp.dot(ab_ref[...], xw, preferred_element_type=jnp.float32)
    else:
        acc = xw[0:ts]
        for j in range(1, kernel_size):
            acc = acc + xw[j:j + ts]
    o_ref[...] = (acc * (1.0 / kernel_size))[jnp.newaxis].astype(o_ref.dtype)


# ---------------------------------------------------------------------------
# Wrapper
# ---------------------------------------------------------------------------


def moving_avg(x, kernel_size, stride, *, max_seq_tile=1024):
    """Pallas-TPU equivalent of the PyTorch `moving_avg.forward`.

    x: (B, S, D) -> (B, S_out, D): replicate (K-1)//2 rows at both ends of the
    sequence axis, then AvgPool1d(kernel_size, stride, padding=0) along it.
    """
    B, S, D = x.shape
    kernel_size = int(kernel_size)
    stride = int(stride)
    assert kernel_size >= 1 and stride >= 1 and S >= 1
    pad = (kernel_size - 1) // 2
    s_pad = S + 2 * pad
    s_out = (s_pad - kernel_size) // stride + 1
    assert s_out >= 1
    out_dtype = x.dtype

    # ---- Seq-tiled path: stride 1, odd K, long sequence --------------------
    use_tiled = (stride == 1 and kernel_size % 2 == 1 and kernel_size >= 3
                 and s_out == S and S > max_seq_tile)
    ts = halo = None
    if use_tiled:
        halo = _round_up(pad, _SUBLANE)
        ts = _pick_ts(S, halo, max_seq_tile, min_ts=min(S, 4 * halo, 256))
        use_tiled = ts is not None and pad <= ts

    if use_tiled:
        n_ts = S // ts
        r = ts // halo                       # halo granules per seq tile
        n_halo = S // halo
        dt = _pick_dt(D, ts + 2 * halo)
        n_dt = pl.cdiv(D, dt)
        use_mxu = kernel_size > _UNROLL_K_MAX
        kern = functools.partial(
            _tiled_kernel, kernel_size=kernel_size, pad=pad, halo=halo,
            n_seq_tiles=n_ts, use_mxu=use_mxu)
        in_specs = [
            # main tile: rows [i*ts, (i+1)*ts)
            pl.BlockSpec((1, ts, dt), lambda b, d, i: (b, i, d)),
            # front halo granule: rows [i*ts - halo, i*ts), clamped at 0
            pl.BlockSpec((1, halo, dt),
                         lambda b, d, i: (b, jnp.maximum(i * r - 1, 0), d)),
            # back halo granule: rows [(i+1)*ts, (i+1)*ts + halo), clamped
            pl.BlockSpec((1, halo, dt),
                         lambda b, d, i: (b, jnp.minimum((i + 1) * r,
                                                         n_halo - 1), d)),
        ]
        args = (x, x, x)
        if use_mxu:
            # Constant band (fetched once: its block index never changes).
            in_specs = ([pl.BlockSpec((ts, ts + 2 * pad),
                                      lambda b, d, i: (0, 0))] + in_specs)
            args = (_band_matrix(ts, kernel_size, pad),) + args
        return pl.pallas_call(
            kern,
            out_shape=jax.ShapeDtypeStruct((B, s_out, D), out_dtype),
            grid_spec=pltpu.PrefetchScalarGridSpec(
                num_scalar_prefetch=0,
                grid=(B, n_dt, n_ts),
                in_specs=in_specs,
                out_specs=pl.BlockSpec((1, ts, dt), lambda b, d, i: (b, i, d)),
            ),
            compiler_params=pltpu.CompilerParams(
                dimension_semantics=("parallel", "parallel", "parallel"),
                vmem_limit_bytes=_VMEM_LIMIT_BYTES),
        )(*args)

    # ---- Full-sequence-per-block paths (VMEM bounded via `dt`) -------------
    dt = _pick_dt(D, S + s_out)
    n_dt = pl.cdiv(D, dt)
    cparams = pltpu.CompilerParams(
        dimension_semantics=("parallel", "parallel"),
        vmem_limit_bytes=_VMEM_LIMIT_BYTES)

    if stride == 1 and kernel_size <= _UNROLL_K_MAX:
        kern = functools.partial(_full_direct_kernel,
                                 kernel_size=kernel_size, pad=pad)
        return pl.pallas_call(
            kern,
            out_shape=jax.ShapeDtypeStruct((B, s_out, D), out_dtype),
            grid_spec=pltpu.PrefetchScalarGridSpec(
                num_scalar_prefetch=0,
                grid=(B, n_dt),
                in_specs=[pl.BlockSpec((1, S, dt), lambda b, d: (b, 0, d))],
                out_specs=pl.BlockSpec((1, s_out, dt), lambda b, d: (b, 0, d)),
            ),
            compiler_params=cparams,
        )(x)

    # General path: any stride / even K / large K.  Padding + stride live in
    # the constant pooling matrix, so only s_out rows are computed/stored and
    # no wrapper-side decimation or slicing is needed.
    # TODO(synk): for very long sequences with stride > 1 the (s_out, S)
    # pooling matrix grows quadratically; a seq-tiled strided path would be
    # needed there.
    a = _pool_matrix(S, kernel_size, stride, pad, s_out)
    kern = functools.partial(_full_matmul_kernel, kernel_size=kernel_size)
    return pl.pallas_call(
        kern,
        out_shape=jax.ShapeDtypeStruct((B, s_out, D), out_dtype),
        grid_spec=pltpu.PrefetchScalarGridSpec(
            num_scalar_prefetch=0,
            grid=(B, n_dt),
            in_specs=[pl.BlockSpec((s_out, S), lambda b, d: (0, 0)),
                      pl.BlockSpec((1, S, dt), lambda b, d: (b, 0, d))],
            out_specs=pl.BlockSpec((1, s_out, dt), lambda b, d: (b, 0, d)),
        ),
        compiler_params=cparams,
    )(a, x)


# ---------------------------------------------------------------------------
# Reference + self-test
# ---------------------------------------------------------------------------


def _reference(x, kernel_size, stride):
    pad = (kernel_size - 1) // 2
    front = jnp.repeat(x[:, 0:1, :], pad, axis=1)
    end = jnp.repeat(x[:, -1:, :], pad, axis=1)
    xp = jnp.concatenate([front, x, end], axis=1)
    s_pad = xp.shape[1]
    s_out = (s_pad - kernel_size) // stride + 1
    outs = [jnp.mean(xp[:, t * stride:t * stride + kernel_size, :], axis=1)
            for t in range(s_out)]
    return jnp.stack(outs, axis=1)


if __name__ == "__main__":
    key = jax.random.PRNGKey(0)
    # (B, S, D, kernel_size, stride, max_seq_tile, atol)
    # MXU-path cases use a slightly looser tolerance to cover multi-pass f32
    # MXU rounding; direct-add cases stay at 2e-5.
    cases = [
        (2, 64, 32, 5, 1, 1024, 2e-5),    # full-seq direct path (small K)
        (2, 8, 112, 5, 1, 1024, 2e-5),    # non-128-multiple D, short sequence
        (2, 96, 8, 25, 1, 1024, 1e-3),    # DLinear-style: K>16 -> MXU pooling matrix
        (2, 16, 32, 4, 2, 1024, 1e-3),    # even K, stride 2 -> strided MXU path
        (2, 256, 128, 7, 1, 64, 2e-5),    # forced seq tiling: halos + direct adds
        (2, 256, 128, 25, 1, 64, 1e-3),   # forced seq tiling: halos + MXU band
    ]
    for idx, (B, S, D, K, stride, mts, atol) in enumerate(cases):
        key, sub = jax.random.split(key)
        x = jax.random.normal(sub, (B, S, D), dtype=jnp.float32)
        y = jax.block_until_ready(moving_avg(x, K, stride, max_seq_tile=mts))
        y_ref = _reference(x, K, stride)
        assert y.shape == y_ref.shape, (idx, y.shape, y_ref.shape)
        err = float(jnp.max(jnp.abs(y - y_ref)))
        assert err <= atol, ("case %d mismatch, max err %e" % (idx, err))
    print("KERNEL_OK")
</pallas_src>

<mosaic_0001>
module attributes {stable_mosaic.version = 11 : i64} {
  func.func @_full_direct_kernel(%arg0: i32, %arg1: i32, %arg2: memref<1x64x32xf32, #tpu.memory_space<vmem>>, %arg3: memref<1x64x32xf32, #tpu.memory_space<vmem>>) attributes {dimension_semantics = [#tpu.dimension_semantics<parallel>, #tpu.dimension_semantics<parallel>], iteration_bounds = array<i64: 2, 1>, scalar_prefetch = 0 : i64, scratch_operands = 0 : i64, tpu.core_type = #tpu.core_type<tc>, window_params = [{transform_indices = @transform_0, window_bounds = array<i64: 1, 64, 32>}, {transform_indices = @transform_1, window_bounds = array<i64: 1, 64, 32>}]} {
    %c0 = arith.constant 0 : index
    %c0_0 = arith.constant 0 : index
    %c0_1 = arith.constant 0 : index
    %0 = vector.load %arg2[%c0, %c0_0, %c0_1] : memref<1x64x32xf32, #tpu.memory_space<vmem>>, vector<1x64x32xf32>
    %1 = vector.shape_cast %0 : vector<1x64x32xf32> to vector<64x32xf32>
    %2 = vector.extract_strided_slice %1 {offsets = [0, 0], sizes = [1, 32], strides = [1, 1]} : vector<64x32xf32> to vector<1x32xf32>
    %3 = vector.shape_cast %2 : vector<1x32xf32> to vector<1x32xf32>
    %4 = vector.broadcast %3 : vector<1x32xf32> to vector<2x32xf32>
    %5 = vector.extract_strided_slice %1 {offsets = [63, 0], sizes = [1, 32], strides = [1, 1]} : vector<64x32xf32> to vector<1x32xf32>
    %6 = vector.shape_cast %5 : vector<1x32xf32> to vector<1x32xf32>
    %7 = vector.broadcast %6 : vector<1x32xf32> to vector<2x32xf32>
    %8 = tpu.concatenate %4, %1, %7 in 0 : vector<2x32xf32>, vector<64x32xf32>, vector<2x32xf32> -> vector<68x32xf32>
    %9 = vector.extract_strided_slice %8 {offsets = [0, 0], sizes = [64, 32], strides = [1, 1]} : vector<68x32xf32> to vector<64x32xf32>
    %10 = vector.extract_strided_slice %8 {offsets = [1, 0], sizes = [64, 32], strides = [1, 1]} : vector<68x32xf32> to vector<64x32xf32>
    %11 = arith.addf %9, %10 : vector<64x32xf32>
    %12 = vector.extract_strided_slice %8 {offsets = [2, 0], sizes = [64, 32], strides = [1, 1]} : vector<68x32xf32> to vector<64x32xf32>
    %13 = arith.addf %11, %12 : vector<64x32xf32>
    %14 = vector.extract_strided_slice %8 {offsets = [3, 0], sizes = [64, 32], strides = [1, 1]} : vector<68x32xf32> to vector<64x32xf32>
    %15 = arith.addf %13, %14 : vector<64x32xf32>
    %16 = vector.extract_strided_slice %8 {offsets = [4, 0], sizes = [64, 32], strides = [1, 1]} : vector<68x32xf32> to vector<64x32xf32>
    %17 = arith.addf %15, %16 : vector<64x32xf32>
    %cst = arith.constant 2.000000e-01 : f32
    %18 = vector.broadcast %cst : f32 to vector<64x32xf32>
    %19 = arith.mulf %17, %18 : vector<64x32xf32>
    %20 = vector.shape_cast %19 : vector<64x32xf32> to vector<1x64x32xf32>
    %c0_2 = arith.constant 0 : index
    %c0_3 = arith.constant 0 : index
    %c0_4 = arith.constant 0 : index
    %21 = vector.load %arg3[%c0_2, %c0_3, %c0_4] : memref<1x64x32xf32, #tpu.memory_space<vmem>>, vector<1x64x32xf32>
    tpu.vector_store %arg3[%c0_2, %c0_3, %c0_4], %20 {strides = array<i32>} : memref<1x64x32xf32, #tpu.memory_space<vmem>>, vector<1x64x32xf32>,
    return
  }
  func.func @transform_0(%arg0: i32, %arg1: i32) -> (i32, i32, i32) {
    %c0_i32 = arith.constant 0 : i32
    %c0_i32_0 = arith.constant 0 : i32
    return %arg0, %c0_i32, %arg1 : i32, i32, i32
  }
  func.func @transform_1(%arg0: i32, %arg1: i32) -> (i32, i32, i32) {
    %c0_i32 = arith.constant 0 : i32
    %c0_i32_0 = arith.constant 0 : i32
    return %arg0, %c0_i32, %arg1 : i32, i32, i32
  }
}

</mosaic_0001>

<llo_original>
// kernel: tpu_custom_call.1
$region0: #{tpu_custom_call.1}
  #allocation0 [shape = 'u32[]', space=smem, size = 0x4, offset = 0x4, fixed_abs, tag = 'smem constant byte address 0x4 - core index']
  #allocation1 [shape = 'u32[144,128]{1,0:T(1,128)}', space=vmem, size = 0x12000, scoped, tag = 'internal scratch']
  %s0 = inlined_call_operand.hbm [shape: f32[2,64,32], index: 0, kind: input, shape index: {}]
  %s1 = inlined_call_operand.hbm [shape: f32[2,64,32], index: 1, kind: output, shape index: {}]
  %s2 = sld [smem:[#allocation0]]
  $region41: #{tpu_custom_call.1} parent=0
    _
  %s4 = ssub.s32 1, %s2
  %s5 = scalar_select 0, %s4, %s2
  $region1: #{tpu_custom_call.1} parent=0
    #allocation2 [shape = 'u8[65536]{0}', space=vmem, size = 0x10000, scoped, tag = 'input window, operand 0']
    #allocation3 [shape = 's32[2]{0}', space=sflag, size = 0x8, scoped, tag = 'scoped memory for tpu_custom_call.1']
    #allocation4 [shape = 's32[2]{0}', space=sflag, size = 0x8, scoped, tag = 'scoped memory for tpu_custom_call.1']
    #allocation5 [shape = 'u8[65536]{0}', space=vmem, size = 0x10000, scoped, tag = 'output window, operand 0']
    %6 = vsyncpa [#allocation3], 0
    %s7 = scalar_lea.sflag [#allocation3], 1
    %8 = vsyncpa %s7, 0
    %9 = vsyncpa [#allocation4], 0
    %s10 = scalar_lea.sflag [#allocation4], 1
    %11 = vsyncpa %s10, 0
    loop: start=0, step=1, limit=4
    $region2: #{tpu_custom_call.1} parent=1 // loop_pre_header
      _
    $region3: #{tpu_custom_call.1} parent=1 // loop_header
      %s13 = sphi 0, %s17
      %p14 = scmp.ge.s32.totalorder %s13, 4
      %s20 = sphi 0, %s32
      %s21 = sphi 0, %s28
      %s22 = sphi 0, %s20
      %s23 = sphi 0, %s21
      %s24 = sphi 0, %s22
      %s25 = sphi 0, %s23
      %s37 = sphi 0, %s39
      %s40 = sphi 0, %s37
      %s41 = sphi 0, %s40
      %s57 = sphi 0, %s41
      %s65 = sphi 0, %s67
      %s68 = sphi 0, %s65
      %s69 = sphi 0, %s68
      %s85 = sphi 0, %s69
    $region4: #{tpu_custom_call.1} parent=1 // loop_header_branch
      %16 = sbr.rel (%p14) target = $region8
    $region5: #{tpu_custom_call.1} parent=1 // loop_body
      %s18 = ssub.s32 %s13, 1
      %s19 = ssub.s32 %s13, 2
      %s26 = sadd.s32 1, %s21
      %p27 = scmp.ge.s32.totalorder %s26, 1
      %s28 = scalar_select %p27, 0, %s26
      %s29 = sadd.s32 1, %s20
      %s30 = scalar_select %p27, %s29, %s20
      %p31 = scmp.ge.s32.totalorder %s30, 2
      %s32 = scalar_select %p31, 0, %s30
      %s33 = ssub.s32 %s20, %s32
      %s34 = ssub.s32 %s21, %s28
      %s35 = sor.u32 %s33, %s34
      %p36 = scmp.eq.s32.totalorder %s35, 0
      %s38 = sadd.s32 %s37, 1
      %s39 = scalar_select %p36, %s37, %s38
      %p42 = pneg %p36
      %p43 = scmp.eq.s32.totalorder %s13, 1
      %p44 = por %p42, %p43
      %p45 = scmp.ne.s32.totalorder %s37, %s40
      %p46 = scmp.eq.s32.totalorder %s13, 0
      %p47 = por %p45, %p46
      %p48 = scmp.ne.s32.totalorder %s37, %s40
      %p49 = scmp.eq.s32.totalorder %s18, 1
      %p50 = por %p48, %p49
      %p51 = scmp.ne.s32.totalorder %s40, %s41
      %p52 = scmp.eq.s32.totalorder %s18, 0
      %p53 = por %p51, %p52
      %p54 = scmp.ne.s32.totalorder %s40, %s41
      %p55 = scmp.eq.s32.totalorder %s19, 1
      %p56 = por %p54, %p55
      %p58 = scmp.ne.s32.totalorder %s41, %s57
      %p59 = scmp.eq.s32.totalorder %s19, 0
      %p60 = por %p58, %p59
      %s61 = ssub.s32 %s20, %s32
      %s62 = ssub.s32 %s21, %s28
      %s63 = sor.u32 %s61, %s62
      %p64 = scmp.eq.s32.totalorder %s63, 0
      %s66 = sadd.s32 %s65, 1
      %s67 = scalar_select %p64, %s65, %s66
      %p70 = pneg %p64
      %p71 = scmp.eq.s32.totalorder %s13, 1
      %p72 = por %p70, %p71
      %p73 = scmp.ne.s32.totalorder %s65, %s68
      %p74 = scmp.eq.s32.totalorder %s13, 0
      %p75 = por %p73, %p74
      %p76 = scmp.ne.s32.totalorder %s65, %s68
      %p77 = scmp.eq.s32.totalorder %s18, 1
      %p78 = por %p76, %p77
      %p79 = scmp.ne.s32.totalorder %s68, %s69
      %p80 = scmp.eq.s32.totalorder %s18, 0
      %p81 = por %p79, %p80
      %p82 = scmp.ne.s32.totalorder %s68, %s69
      %p83 = scmp.eq.s32.totalorder %s19, 1
      %p84 = por %p82, %p83
      %p86 = scmp.ne.s32.totalorder %s69, %s85
      %p87 = scmp.eq.s32.totalorder %s19, 0
      %p88 = por %p86, %p87
      %p89 = scmp.le.s32.totalorder 1, %s13
      %p90 = scmp.lt.s32.totalorder %s13, 3
      %p91 = pnand %p89, %p90
      %p92 = pneg %p91
      // Predicated region
      $region9: #{tpu_custom_call.1} parent=5 // pred_check
        _
      $region10: #{tpu_custom_call.1} parent=5 // pred_check_branch
        %94 = sbr.rel (%p91) target = $region12
      $region11: #{tpu_custom_call.1} parent=5 // pred_region
        %s95 = ssub.s32 %s13, 1
      $region12: #{tpu_custom_call.1} parent=5 // pred_fallthru
        _
      %p96 = scmp.lt.s32.totalorder %s13, 2
      // Predicated region
      $region13: #{tpu_custom_call.1} parent=5 // pred_check
        %p97 = pneg %p96
      $region14: #{tpu_custom_call.1} parent=5 // pred_check_branch
        %99 = sbr.rel (%p97) target = $region16
      $region15: #{tpu_custom_call.1} parent=5 // pred_region
        // Predicated region
        $region17: #{tpu_custom_call.1} parent=15 // pred_check
          %p100 = pneg %p47
        $region18: #{tpu_custom_call.1} parent=15 // pred_check_branch
          %102 = sbr.rel (%p100) target = $region20
        $region19: #{tpu_custom_call.1} parent=15 // pred_region
          %s103 = sand.u32 %s37, 1
          %s104 = scalar_lea.sflag [#allocation3], %s103
          %s105 = sand.u32 %s37, 1
          %s106 = smul.addr %s105, 64
          %s107 = scalar_lea.vmem [#allocation2], %s106
          %s109 = ssub.s32 1024, 1024
          %110 = vsyncadd %s104, %s109
          %s111 = smul.addr %s20, 8
          %s112 = sadd.s32 %s21, %s111
          %s113 = smul.addr %s112, 128
          %s114 = scalar_lea.hbm %s0, %s113
          %s115 = sshll.u32 %s107, 4
          %s116 = int_to_ptr.vmem [resolvable:$true] %s115
          %121 = dma.hbm_to_vmem [thread:$0]  %s114, 1024, %s116, %s104, 128, 128, 8
        $region20: #{tpu_custom_call.1} parent=15 // pred_fallthru
          _
      $region16: #{tpu_custom_call.1} parent=5 // pred_fallthru
        _
      %p122 = scmp.le.s32.totalorder 1, %s13
      %p123 = scmp.lt.s32.totalorder %s13, 3
      %p124 = pnand %p122, %p123
      %p125 = pneg %p124
      // Predicated region
      $region21: #{tpu_custom_call.1} parent=5 // pred_check
        _
      $region22: #{tpu_custom_call.1} parent=5 // pred_check_branch
        %127 = sbr.rel (%p124) target = $region24
      $region23: #{tpu_custom_call.1} parent=5 // pred_region
        %s128 = ssub.s32 %s13, 1
        %s129 = sand.u32 %s40, 1
        %s130 = scalar_lea.sflag [#allocation3], %s129
        %s131 = sand.u32 %s40, 1
        %s132 = smul.addr %s131, 64
        %s133 = scalar_lea.vmem [#allocation2], %s132
        // Predicated region
        $region25: #{tpu_custom_call.1} parent=23 // pred_check
          %p134 = pneg %p53
        $region26: #{tpu_custom_call.1} parent=23 // pred_check_branch
          %136 = sbr.rel (%p134) target = $region28
        $region27: #{tpu_custom_call.1} parent=23 // pred_region
          %137 = dma.done %s130, 1024
        $region28: #{tpu_custom_call.1} parent=23 // pred_fallthru
          _
        %s138 = sand.u32 %s40, 1
        %s139 = scalar_lea.sflag [#allocation3], %s138
        %s140 = sand.u32 %s40, 1
        %s141 = smul.addr %s140, 64
        %s142 = scalar_lea.vmem [#allocation2], %s141
        %p143 = pneg %p53
        %p144 = pneg %p50
        %p145 = pneg %p81
        %p146 = pneg %p78
        %s147 = sand.u32 %s68, 1
        %s148 = scalar_lea.sflag [#allocation4], %s147
        %s149 = sand.u32 %s68, 1
        %s150 = smul.addr %s149, 64
        %s151 = scalar_lea.vmem [#allocation5], %s150
        %v152 = vld [vmem:[%s133] sm:$0xff]
        %v153 = vld [vmem:[%s133 + $0x8] sm:$0xff]
        %v154 = vld [vmem:[%s133 + $0x10] sm:$0xff]
        %v155 = vld [vmem:[%s133 + $0x18] sm:$0xff]
        %v156 = vld [vmem:[%s133 + $0x20] sm:$0xff]
        %v157 = vld [vmem:[%s133 + $0x28] sm:$0xff]
        %v158 = vld [vmem:[%s133 + $0x30] sm:$0xff]
        %v159 = vld [vmem:[%s133 + $0x38] sm:$0xff]
        %v160 = vlaneseq
        %v161 = vshrl.u32 %v160, 7
        %v162 = vsub.s32 0, %v161
        %v163 = vrot.slane %v152, %v162
        %v164 = vlaneseq
        %v165 = vshrl.u32 %v164, 7
        %v166 = vsub.s32 7, %v165
        %v167 = vrot.slane %v159, %v166
        %vm176 = vcmask 1041408
        %v177 = vrot.slane %v152, 6
        %v178 = vrot.slane %v153, 6
        %v179 = vsel %vm176, %v177, %v178
        %v180 = vrot.slane %v154, 6
        %v181 = vsel %vm176, %v178, %v180
        %v182 = vrot.slane %v155, 6
        %v183 = vsel %vm176, %v180, %v182
        %v184 = vrot.slane %v156, 6
        %v185 = vsel %vm176, %v182, %v184
        %v186 = vrot.slane %v157, 6
        %v187 = vsel %vm176, %v184, %v186
        %v188 = vrot.slane %v158, 6
        %v189 = vsel %vm176, %v186, %v188
        %v190 = vrot.slane %v159, 6
        %v191 = vsel %vm176, %v188, %v190
        %v201 = vsel %vm176, %v163, %v177
        %v202 = vsel %vm176, %v190, %v167
        %vm205 = vcmask 1046528
        %v206 = vrot.slane %v201, 1
        %v207 = vrot.slane %v179, 1
        %v208 = vsel %vm205, %v206, %v207
        %v209 = vrot.slane %v181, 1
        %v210 = vsel %vm205, %v207, %v209
        %v211 = vrot.slane %v183, 1
        %v212 = vsel %vm205, %v209, %v211
        %v213 = vrot.slane %v185, 1
        %v214 = vsel %vm205, %v211, %v213
        %v215 = vrot.slane %v187, 1
        %v216 = vsel %vm205, %v213, %v215
        %v217 = vrot.slane %v189, 1
        %v218 = vsel %vm205, %v215, %v217
        %v219 = vrot.slane %v191, 1
        %v220 = vsel %vm205, %v217, %v219
        %v221 = vrot.slane %v202, 1
        %v222 = vsel %vm205, %v219, %v221
        %v231 = vadd.f32 %v201, %v208
        %v232 = vadd.f32 %v179, %v210
        %v233 = vadd.f32 %v181, %v212
        %v234 = vadd.f32 %v183, %v214
        %v235 = vadd.f32 %v185, %v216
        %v236 = vadd.f32 %v187, %v218
        %v237 = vadd.f32 %v189, %v220
        %v238 = vadd.f32 %v191, %v222
        %vm239 = vcmask 1045504
        %v240 = vrot.slane %v201, 2
        %v241 = vrot.slane %v179, 2
        %v242 = vsel %vm239, %v240, %v241
        %v243 = vrot.slane %v181, 2
        %v244 = vsel %vm239, %v241, %v243
        %v245 = vrot.slane %v183, 2
        %v246 = vsel %vm239, %v243, %v245
        %v247 = vrot.slane %v185, 2
        %v248 = vsel %vm239, %v245, %v247
        %v249 = vrot.slane %v187, 2
        %v250 = vsel %vm239, %v247, %v249
        %v251 = vrot.slane %v189, 2
        %v252 = vsel %vm239, %v249, %v251
        %v253 = vrot.slane %v191, 2
        %v254 = vsel %vm239, %v251, %v253
        %v255 = vrot.slane %v202, 2
        %v256 = vsel %vm239, %v253, %v255
        %v265 = vadd.f32 %v231, %v242
        %v266 = vadd.f32 %v232, %v244
        %v267 = vadd.f32 %v233, %v246
        %v268 = vadd.f32 %v234, %v248
        %v269 = vadd.f32 %v235, %v250
        %v270 = vadd.f32 %v236, %v252
        %v271 = vadd.f32 %v237, %v254
        %v272 = vadd.f32 %v238, %v256
        %vm273 = vcmask 1044480
        %v274 = vrot.slane %v201, 3
        %v275 = vrot.slane %v179, 3
        %v276 = vsel %vm273, %v274, %v275
        %v277 = vrot.slane %v181, 3
        %v278 = vsel %vm273, %v275, %v277
        %v279 = vrot.slane %v183, 3
        %v280 = vsel %vm273, %v277, %v279
        %v281 = vrot.slane %v185, 3
        %v282 = vsel %vm273, %v279, %v281
        %v283 = vrot.slane %v187, 3
        %v284 = vsel %vm273, %v281, %v283
        %v285 = vrot.slane %v189, 3
        %v286 = vsel %vm273, %v283, %v285
        %v287 = vrot.slane %v191, 3
        %v288 = vsel %vm273, %v285, %v287
        %v289 = vrot.slane %v202, 3
        %v290 = vsel %vm273, %v287, %v289
        %v299 = vadd.f32 %v265, %v276
        %v300 = vadd.f32 %v266, %v278
        %v301 = vadd.f32 %v267, %v280
        %v302 = vadd.f32 %v268, %v282
        %v303 = vadd.f32 %v269, %v284
        %v304 = vadd.f32 %v270, %v286
        %v305 = vadd.f32 %v271, %v288
        %v306 = vadd.f32 %v272, %v290
        %vm307 = vcmask 1043456
        %v308 = vrot.slane %v201, 4
        %v309 = vrot.slane %v179, 4
        %v310 = vsel %vm307, %v308, %v309
        %v311 = vrot.slane %v181, 4
        %v312 = vsel %vm307, %v309, %v311
        %v313 = vrot.slane %v183, 4
        %v314 = vsel %vm307, %v311, %v313
        %v315 = vrot.slane %v185, 4
        %v316 = vsel %vm307, %v313, %v315
        %v317 = vrot.slane %v187, 4
        %v318 = vsel %vm307, %v315, %v317
        %v319 = vrot.slane %v189, 4
        %v320 = vsel %vm307, %v317, %v319
        %v321 = vrot.slane %v191, 4
        %v322 = vsel %vm307, %v319, %v321
        %v323 = vrot.slane %v202, 4
        %v324 = vsel %vm307, %v321, %v323
        %v333 = vadd.f32 %v299, %v310
        %v334 = vadd.f32 %v300, %v312
        %v335 = vadd.f32 %v301, %v314
        %v336 = vadd.f32 %v302, %v316
        %v337 = vadd.f32 %v303, %v318
        %v338 = vadd.f32 %v304, %v320
        %v339 = vadd.f32 %v305, %v322
        %v340 = vadd.f32 %v306, %v324
        %v341 = vmul.f32 %v333, 0.2
        %v342 = vmul.f32 %v334, 0.2
        %v343 = vmul.f32 %v335, 0.2
        %v344 = vmul.f32 %v336, 0.2
        %v345 = vmul.f32 %v337, 0.2
        %v346 = vmul.f32 %v338, 0.2
        %v347 = vmul.f32 %v339, 0.2
        %v348 = vmul.f32 %v340, 0.2
        %vm349 = vcmask 261120
        %350 = vst.msk [vmem:[%s151] sm:$0xff] %vm349, %v341
        %351 = vst.msk [vmem:[%s151 + $0x8] sm:$0xff] %vm349, %v342
        %352 = vst.msk [vmem:[%s151 + $0x10] sm:$0xff] %vm349, %v343
        %353 = vst.msk [vmem:[%s151 + $0x18] sm:$0xff] %vm349, %v344
        %354 = vst.msk [vmem:[%s151 + $0x20] sm:$0xff] %vm349, %v345
        %355 = vst.msk [vmem:[%s151 + $0x28] sm:$0xff] %vm349, %v346
        %356 = vst.msk [vmem:[%s151 + $0x30] sm:$0xff] %vm349, %v347
        %357 = vst.msk [vmem:[%s151 + $0x38] sm:$0xff] %vm349, %v348
        %s358 = sand.u32 %s68, 1
        %s359 = scalar_lea.sflag [#allocation4], %s358
        %s360 = sand.u32 %s68, 1
        %s361 = smul.addr %s360, 64
        %s362 = scalar_lea.vmem [#allocation5], %s361
        // Predicated region
        $region29: #{tpu_custom_call.1} parent=23 // pred_check
          %p363 = pneg %p78
        $region30: #{tpu_custom_call.1} parent=23 // pred_check_branch
          %365 = sbr.rel (%p363) target = $region32
        $region31: #{tpu_custom_call.1} parent=23 // pred_region
          %s367 = ssub.s32 1024, 1024
          %368 = vsyncadd %s359, %s367
          %s369 = smul.addr %s22, 8
          %s370 = sadd.s32 %s23, %s369
          %s371 = smul.addr %s370, 128
          %s372 = scalar_lea.hbm %s1, %s371
          %s373 = sshll.u32 %s362, 4
          %s374 = int_to_ptr.vmem [resolvable:$true] %s373
          %379 = dma.vmem_to_hbm [thread:$0]  %s374, 1024, %s372, %s359, 128, 128, 8
        $region32: #{tpu_custom_call.1} parent=23 // pred_fallthru
          _
      $region24: #{tpu_custom_call.1} parent=5 // pred_fallthru
        _
      %p380 = scmp.le.s32.totalorder 2, %s13
      // Predicated region
      $region33: #{tpu_custom_call.1} parent=5 // pred_check
        %p381 = pneg %p380
      $region34: #{tpu_custom_call.1} parent=5 // pred_check_branch
        %383 = sbr.rel (%p381) target = $region36
      $region35: #{tpu_custom_call.1} parent=5 // pred_region
        %s384 = ssub.s32 %s13, 2
        // Predicated region
        $region37: #{tpu_custom_call.1} parent=35 // pred_check
          %p385 = pneg %p84
        $region38: #{tpu_custom_call.1} parent=35 // pred_check_branch
          %387 = sbr.rel (%p385) target = $region40
        $region39: #{tpu_custom_call.1} parent=35 // pred_region
          %s388 = sand.u32 %s69, 1
          %s389 = scalar_lea.sflag [#allocation4], %s388
          %s390 = sand.u32 %s69, 1
          %s391 = smul.addr %s390, 64
          %s392 = scalar_lea.vmem [#allocation5], %s391
          %393 = dma.done %s389, 1024
        $region40: #{tpu_custom_call.1} parent=35 // pred_fallthru
          _
      $region36: #{tpu_custom_call.1} parent=5 // pred_fallthru
        _
    $region6: #{tpu_custom_call.1} parent=1 // loop_footer
      %s17 = sadd.s32 1, %s13
    $region7: #{tpu_custom_call.1} parent=1 // loop_footer_branch
      %12 = sbr.rel target = $region3
    $region8: #{tpu_custom_call.1} parent=1 // loop_exit
      _
    %394 = vsyncpa [#allocation3], 1
    %s395 = scalar_lea.sflag [#allocation3], 1
    %396 = vsyncpa %s395, 1
    %397 = vsyncpa [#allocation4], 1
    %s398 = scalar_lea.sflag [#allocation4], 1
    %399 = vsyncpa %s398, 1

</llo_original>
